<compile_context>
chip_gen: v7x
topology: tpu7x:2x2x1
jax: 0.10.0
libtpu: 0.0.40
codegen_flags: <defaults>
</compile_context>

<pallas_src>
import functools

import jax
import jax.numpy as jnp
from jax.experimental import pallas as pl
from jax.experimental.pallas import tpu as pltpu


# ----------------------------------------------------------------------------
# Device-generation gating (perf only; semantics identical on all chips).
# ----------------------------------------------------------------------------
try:
    _DEVICE_KIND = jax.devices()[0].device_kind.lower()
except Exception:  # pragma: no cover
    _DEVICE_KIND = ""
_OLD_GEN = any(k in _DEVICE_KIND for k in ("v2", "v3", "v4", "v5"))
_IS_V7 = "v7" in _DEVICE_KIND

_PARALLEL = getattr(pltpu, "PARALLEL", "parallel")
_ARBITRARY = getattr(pltpu, "ARBITRARY", "arbitrary")
# Only core-parallel semantics actually shard a grid axis across v7x's 2 TCs.
_DST_SEM = getattr(pltpu, "CORE_PARALLEL", _PARALLEL) if _IS_V7 else _PARALLEL
# bf16 exp roughly doubles EUP throughput on v6e/v7x; older gens lack bf16 EUP.
_EXP_DTYPE = jnp.float32 if _OLD_GEN else jnp.bfloat16


def _round_up(x, m):
    return ((x + m - 1) // m) * m


def _row_tile(n_pad):
    for t in (1024, 512, 256, 128):
        if n_pad % t == 0:
            return t
    return n_pad


def _pick_tiles(n):
    """(n_pad, tv, tu, tn): attention dst/src tiles + fc row tile.

    Per perf review: use the largest tiles that comfortably fit VMEM and pad N
    up to the tile grid instead of falling back to 128-wide tiles.
    """
    if n <= 128:
        n_pad = _round_up(max(n, 8), 8)
        return n_pad, n_pad, n_pad, n_pad            # single full-dim block
    n_pad = _round_up(n, 128)
    if n_pad <= 2048:
        # whole graph in one attention tile (<= 4 MiB adjacency per buffer)
        tn = n_pad if n_pad <= 1024 else _row_tile(n_pad)
        return n_pad, n_pad, n_pad, tn
    # large graphs: big dst/src tiles, pad N up to the tile grid
    return _round_up(n_pad, 1024), 512, 1024, 512


def _vmem_limit(need_bytes):
    # Actual double-buffered working set plus margin; keep well under v7x's
    # 64 MiB physical VMEM while still raising the 32 MiB default when useful.
    return int(min(max(2 * need_bytes + (8 << 20), 32 << 20), 48 << 20))


# ----------------------------------------------------------------------------
# Kernel 1: fc (z = h @ W) + attention logit terms (el, er) for all heads.
# ----------------------------------------------------------------------------
def _fc_kernel(h_ref, w_ref, a_ref, z_ref, el_er_ref):
    # Inputs are pre-cast to bf16 once in the wrapper (no per-tile VPU casts).
    z = jnp.dot(h_ref[...], w_ref[...], preferred_element_type=jnp.float32)
    # One MXU matmul against a zero-padded block-diagonal [H*D, 128] matrix
    # computes el (cols [0,H)) and er (cols [H,2H)) for every head at once;
    # the 128-lane output keeps this store lane-dense (no vst.msk).
    el_er_ref[...] = jnp.dot(z.astype(jnp.bfloat16), a_ref[...],
                             preferred_element_type=jnp.float32)
    z_ref[...] = z.astype(jnp.bfloat16)              # bf16: halves HBM traffic


# ----------------------------------------------------------------------------
# Kernel 2: masked edge softmax + aggregation (online softmax over src tiles).
#   grid = (dst_tiles [parallel / core_parallel], src_tiles [arbitrary])
# ----------------------------------------------------------------------------
def _attn_agg_kernel(cnt_ref, adj_ref, er_ref, elt_ref, z_ref, b_ref, out_ref,
                     m_sc, l_sc, acc_sc, *, num_heads, out_dim, hd_pad,
                     neg_slope, exp_dtype):
    i = pl.program_id(0)
    j = pl.program_id(1)
    hd = num_heads * out_dim

    @pl.when(j == 0)
    def _():
        # -1e30 (not -inf) so fully-masked rows fall back to a uniform softmax
        # exactly like the dense-masked reference (no NaNs).
        m_sc[...] = jnp.full_like(m_sc, -1e30)
        l_sc[...] = jnp.zeros_like(l_sc)
        acc_sc[...] = jnp.zeros_like(acc_sc)

    # Skip all compute for adjacency tiles with no edges (per-tile edge counts
    # scalar-prefetched into SMEM).  The adj/z DMAs still stream.
    # TODO(synk): data-dependent index_map over non-empty src tiles to also
    # skip the DMA for very sparse graphs.
    @pl.when(cnt_ref[i, j] > 0)
    def _():
        mask = adj_ref[...] > 0                       # [TV, TU] from int8 mask
        z_src = z_ref[...]                            # [TU, H*D] bf16
        er = er_ref[...]                              # [TV, H] f32 (dst term)
        elt = elt_ref[...]                            # [H, TU] f32 (src, pre-T)
        # Load scratch once per src tile; per-head updates stay in registers
        # and are written back with a single lane-dense store each.
        m_all = m_sc[...]
        l_all = l_sc[...]
        acc_all = acc_sc[...]

        m_cols, l_cols, acc_cols = [], [], []
        # TODO(synk): for large H, batch the per-head aggregation matmuls (or
        # pad out_dim to 128) if profiling shows MXU/ld-st slots binding.
        for h in range(num_heads):                    # static, tiny head count
            lo = h * out_dim
            e = er[:, h:h + 1] + elt[h:h + 1, :]                # [TV, TU]
            e = jnp.where(e >= 0, e, neg_slope * e)             # LeakyReLU(0.2)
            e = jnp.where(mask, e, -1e30)                       # mask non-edges

            m_prev = m_all[:, h:h + 1]
            m_new = jnp.maximum(m_prev, jnp.max(e, axis=-1, keepdims=True))
            corr = jnp.exp(m_prev - m_new)                      # [TV,1] f32
            p = jnp.exp((e - m_new).astype(exp_dtype))          # bf16 EUP v6e/v7x

            l_cols.append(corr * l_all[:, h:h + 1]
                          + jnp.sum(p.astype(jnp.float32), axis=-1,
                                    keepdims=True))
            acc_cols.append(
                corr * acc_all[:, lo:lo + out_dim]
                + jnp.dot(p.astype(jnp.bfloat16), z_src[:, lo:lo + out_dim],
                          preferred_element_type=jnp.float32))
            m_cols.append(m_new)

        m_sc[...] = m_cols[0] if num_heads == 1 else jnp.concatenate(m_cols, -1)
        l_sc[...] = l_cols[0] if num_heads == 1 else jnp.concatenate(l_cols, -1)
        acc_sc[...] = (acc_cols[0] if num_heads == 1
                       else jnp.concatenate(acc_cols, -1))

    @pl.when(j == pl.num_programs(1) - 1)
    def _():
        acc_all = acc_sc[...]
        inv = 1.0 / l_sc[...]            # exact divide; finalize runs once/tile
        cols = [acc_all[:, h * out_dim:(h + 1) * out_dim] * inv[:, h:h + 1]
                for h in range(num_heads)]
        res = cols[0] if num_heads == 1 else jnp.concatenate(cols, -1)
        if hd_pad > hd:                  # keep the output store lane-dense
            res = jnp.concatenate(
                [res, jnp.zeros((res.shape[0], hd_pad - hd), res.dtype)], -1)
        out_ref[...] = (res + b_ref[...]).astype(out_ref.dtype)


# ----------------------------------------------------------------------------
# One GATConv layer (two pallas_calls)
# ----------------------------------------------------------------------------
def gat_conv_pallas(adj_i8, cnt, h, p, *, tv, tu, tn, out_dtype,
                    neg_slope=0.2):
    n_pad, fin = h.shape
    H, D = p["num_heads"], p["out_dim"]
    hd = H * D
    hd_pad = p["bias_pad"].shape[1]
    nc = p["attn_mat"].shape[1]

    # ---- kernel 1: z = h @ W and attention logit terms --------------------
    k1_need = 2 * (tn * fin * 2 + fin * hd * 2 + hd * nc * 2
                   + tn * hd * 2 + tn * nc * 4)
    # TODO(synk): add a K (fan-in) grid axis + f32 accumulator for very large
    # in_feat so the fc kernel stays VMEM-bounded on v7x.
    z, el_er = pl.pallas_call(
        _fc_kernel,
        grid=(n_pad // tn,),
        in_specs=[
            pl.BlockSpec((tn, fin), lambda i: (i, 0)),
            pl.BlockSpec((fin, hd), lambda i: (0, 0)),
            pl.BlockSpec((hd, nc), lambda i: (0, 0)),
        ],
        out_specs=[
            pl.BlockSpec((tn, hd), lambda i: (i, 0)),
            pl.BlockSpec((tn, nc), lambda i: (i, 0)),
        ],
        out_shape=[
            jax.ShapeDtypeStruct((n_pad, hd), jnp.bfloat16),
            jax.ShapeDtypeStruct((n_pad, nc), jnp.float32),
        ],
        compiler_params=pltpu.CompilerParams(
            dimension_semantics=(_DST_SEM,),
            vmem_limit_bytes=_vmem_limit(k1_need)),
    )(h, p["w_bf16"], p["attn_mat"])

    er = el_er[:, H:2 * H]            # dest term,   [N, H] (node-major)
    elt = el_er[:, :H].T              # source term, [H, N] (lane-major, once)

    # ---- kernel 2: masked softmax + aggregation ----------------------------
    out_bytes = jnp.dtype(out_dtype).itemsize
    k2_need = (2 * (tv * tu + tv * H * 4 + H * tu * 4 + tu * hd * 2
                    + hd_pad * 4 + tv * hd_pad * out_bytes)
               + 2 * tv * H * 4 + tv * hd * 4)
    kernel = functools.partial(
        _attn_agg_kernel, num_heads=H, out_dim=D, hd_pad=hd_pad,
        neg_slope=neg_slope, exp_dtype=_EXP_DTYPE)
    out = pl.pallas_call(
        kernel,
        grid_spec=pltpu.PrefetchScalarGridSpec(
            num_scalar_prefetch=1,
            grid=(n_pad // tv, n_pad // tu),
            in_specs=[
                pl.BlockSpec((tv, tu), lambda i, j, c: (i, j)),     # adj (int8)
                pl.BlockSpec((tv, H), lambda i, j, c: (i, 0)),      # er  (dst)
                pl.BlockSpec((H, tu), lambda i, j, c: (0, j)),      # el^T (src)
                pl.BlockSpec((tu, hd), lambda i, j, c: (j, 0)),     # z   (src)
                pl.BlockSpec((1, hd_pad), lambda i, j, c: (0, 0)),  # bias
            ],
            out_specs=pl.BlockSpec((tv, hd_pad), lambda i, j, c: (i, 0)),
            scratch_shapes=[
                pltpu.VMEM((tv, H), jnp.float32),     # running max
                pltpu.VMEM((tv, H), jnp.float32),     # running sum
                pltpu.VMEM((tv, hd), jnp.float32),    # running weighted sum
            ]),
        out_shape=jax.ShapeDtypeStruct((n_pad, hd_pad), out_dtype),
        compiler_params=pltpu.CompilerParams(
            dimension_semantics=(_DST_SEM, _ARBITRARY),
            vmem_limit_bytes=_vmem_limit(k2_need)),
    )(cnt, adj_i8, er, elt, z, p["bias_pad"])
    return out[:, :hd]


# ----------------------------------------------------------------------------
# GAT module: parameter construction + multi-layer forward
# ----------------------------------------------------------------------------
def _attn_matrix(attn_l, attn_r):
    """Zero-padded block-diagonal [H*D, >=128] matrix so that z @ A yields
    el in columns [0, H) and er in columns [H, 2H) with a lane-dense output."""
    h, d = attn_l.shape
    nc = max(128, _round_up(2 * h, 128))
    a = jnp.zeros((h * d, nc), jnp.float32)
    for k in range(h):
        a = a.at[k * d:(k + 1) * d, k].set(attn_l[k])
        a = a.at[k * d:(k + 1) * d, h + k].set(attn_r[k])
    return a


def init_gat_params(key, heads, in_feat, n_hidden):
    """Deterministic Xavier-style init matching GAT.__init__ layer shapes."""
    params = []
    fan_in = in_feat
    for h in heads:
        key, k_w, k_l, k_r, k_b = jax.random.split(key, 5)
        hd = h * n_hidden
        w = jax.random.normal(k_w, (fan_in, hd), jnp.float32)
        w = w * jnp.sqrt(2.0 / (fan_in + hd))
        attn_l = jax.random.normal(k_l, (h, n_hidden), jnp.float32) * 0.1
        attn_r = jax.random.normal(k_r, (h, n_hidden), jnp.float32) * 0.1
        bias = jax.random.normal(k_b, (1, hd), jnp.float32) * 0.01
        hd_pad = _round_up(hd, 128)
        bias_pad = jnp.zeros((1, hd_pad), jnp.float32).at[:, :hd].set(bias)
        params.append(dict(
            w=w, attn_l=attn_l, attn_r=attn_r, bias=bias,      # f32 (reference)
            w_bf16=w.astype(jnp.bfloat16),                     # kernel weights
            attn_mat=_attn_matrix(attn_l, attn_r).astype(jnp.bfloat16),
            bias_pad=bias_pad,
            num_heads=h, out_dim=n_hidden))
        fan_in = hd
    return params


def gat_forward(params, adj, node_feature, dst_node_ids):
    """single_graph_forward: chain GATConv layers, return (h, dst_node_ids).

    Precondition (as in DGL): every node has at least one in-edge (e.g. a
    self-loop); isolated destinations otherwise fall back to a uniform softmax.
    """
    n = node_feature.shape[0]
    n_pad, tv, tu, tn = _pick_tiles(n)

    # int8 adjacency mask padded to the tile grid (shared by all layers).
    # TODO(synk): bit-pack the mask (1 bit/edge) for bandwidth-limited v5e.
    adj_i8 = jnp.zeros((n_pad, n_pad), jnp.int8).at[:n, :n].set(
        (adj > 0).astype(jnp.int8))
    # per-(dst-tile, src-tile) edge counts -> SMEM scalar-prefetch tile skip
    cnt = adj_i8.astype(jnp.int32).reshape(
        n_pad // tv, tv, n_pad // tu, tu).sum(axis=(1, 3))

    # bf16 activations between layers (all f32 math stays inside the kernels).
    h = jnp.zeros((n_pad, node_feature.shape[1]), jnp.bfloat16).at[:n].set(
        node_feature.astype(jnp.bfloat16))

    for li, p in enumerate(params):
        last = li == len(params) - 1
        h = gat_conv_pallas(adj_i8, cnt, h, p, tv=tv, tu=tu, tn=tn,
                            out_dtype=jnp.float32 if last else jnp.bfloat16)
    return h[:n], dst_node_ids


# ----------------------------------------------------------------------------
# Pure-JAX f32 reference (for correctness check)
# ----------------------------------------------------------------------------
def _ref_layer(adj, h, p):
    z = h @ p["w"]                                              # [N, H*D]
    n = h.shape[0]
    H, D = p["num_heads"], p["out_dim"]
    z3 = z.reshape(n, H, D)
    el = jnp.einsum("nhd,hd->nh", z3, p["attn_l"])              # [N, H]
    er = jnp.einsum("nhd,hd->nh", z3, p["attn_r"])              # [N, H]
    e = er[:, None, :] + el[None, :, :]                         # [dst, src, H]
    e = jnp.where(e >= 0, e, 0.2 * e)
    e = jnp.where(adj[:, :, None] > 0, e, -1e30)
    e = e - e.max(axis=1, keepdims=True)
    p_ = jnp.exp(e)
    alpha = p_ / p_.sum(axis=1, keepdims=True)
    out = jnp.einsum("vuh,uhd->vhd", alpha, z3)                 # [N, H, D]
    return out.reshape(n, H * D) + p["bias"]


def gat_forward_ref(params, adj, node_feature):
    h = node_feature.astype(jnp.float32)
    for p in params:
        h = _ref_layer(adj, h, p)
    return h


# ----------------------------------------------------------------------------
if __name__ == "__main__":
    key = jax.random.PRNGKey(0)

    # Small synthetic graph snapshot (N=380 -> N_pad=384, a single large
    # attention tile, multi-head + single-head layers, row padding).
    N = 380          # number of nodes
    in_feat = 16     # input node-feature dim
    n_hidden = 32    # hidden dim per head
    heads = [4, 1]   # two GAT layers; last head count 1 -> output [N, n_hidden]

    key, k_adj, k_feat = jax.random.split(key, 3)
    # Random directed edges + self-loops (avoid zero in-degree, as DGL requires).
    adj = (jax.random.uniform(k_adj, (N, N)) < 0.3).astype(jnp.float32)
    adj = jnp.maximum(adj, jnp.eye(N, dtype=jnp.float32))       # adj[dst, src]
    node_feature = jax.random.normal(k_feat, (N, in_feat), jnp.float32)
    dst_node_ids = list(range(N))

    params = init_gat_params(key, heads, in_feat, n_hidden)

    out, ids = gat_forward(params, adj, node_feature, dst_node_ids)
    out = jax.block_until_ready(out)

    ref = gat_forward_ref(params, adj, node_feature)
    assert out.shape == (N, heads[-1] * n_hidden), out.shape
    # Kernel runs matmuls / inter-layer activations in bf16 (f32 accumulation)
    # and does the softmax exp in bf16 on v6e/v7x, so compare against the f32
    # reference with a mixed-precision tolerance.
    assert jnp.allclose(out, ref, atol=5e-2, rtol=5e-2), "mismatch vs reference"

    print("KERNEL_OK")
</pallas_src>

<mosaic_0001>
module attributes {stable_mosaic.version = 11 : i64} {
  func.func @_fc_kernel(%arg0: i32, %arg1: memref<384x16xbf16, #tpu.memory_space<vmem>>, %arg2: memref<16x128xbf16, #tpu.memory_space<vmem>>, %arg3: memref<128x128xbf16, #tpu.memory_space<vmem>>, %arg4: memref<384x128xbf16, #tpu.memory_space<vmem>>, %arg5: memref<384x128xf32, #tpu.memory_space<vmem>>) attributes {dimension_semantics = [#tpu.dimension_semantics<parallel>], iteration_bounds = array<i64: 1>, scalar_prefetch = 0 : i64, scratch_operands = 0 : i64, tpu.core_type = #tpu.core_type<tc>, window_params = [{transform_indices = @transform_0, window_bounds = array<i64: 384, 16>}, {pipeline_mode = #tpu.pipeline_mode<synchronous>, transform_indices = @transform_1, window_bounds = array<i64: 16, 128>}, {pipeline_mode = #tpu.pipeline_mode<synchronous>, transform_indices = @transform_2, window_bounds = array<i64: 128, 128>}, {transform_indices = @transform_3, window_bounds = array<i64: 384, 128>}, {transform_indices = @transform_4, window_bounds = array<i64: 384, 128>}]} {
    %c0 = arith.constant 0 : index
    %c0_0 = arith.constant 0 : index
    %0 = vector.load %arg1[%c0, %c0_0] : memref<384x16xbf16, #tpu.memory_space<vmem>>, vector<384x16xbf16>
    %c0_1 = arith.constant 0 : index
    %c0_2 = arith.constant 0 : index
    %1 = vector.load %arg2[%c0_1, %c0_2] : memref<16x128xbf16, #tpu.memory_space<vmem>>, vector<16x128xbf16>
    %cst = arith.constant dense<0.000000e+00> : vector<384x128xf32>
    %2 = tpu.matmul %0, %1, %cst {dimension_numbers = #tpu.dot_dimension_numbers<[1], [0], [0], [1], [0, 0, 1, 1], [], []>} : vector<384x16xbf16>, vector<16x128xbf16>, vector<384x128xf32> -> vector<384x128xf32>
    %3 = arith.truncf %2 : vector<384x128xf32> to vector<384x128xbf16>
    %c0_3 = arith.constant 0 : index
    %c0_4 = arith.constant 0 : index
    %4 = vector.load %arg3[%c0_3, %c0_4] : memref<128x128xbf16, #tpu.memory_space<vmem>>, vector<128x128xbf16>
    %cst_5 = arith.constant dense<0.000000e+00> : vector<384x128xf32>
    %5 = tpu.matmul %3, %4, %cst_5 {dimension_numbers = #tpu.dot_dimension_numbers<[1], [0], [0], [1], [0, 0, 1, 1], [], []>} : vector<384x128xbf16>, vector<128x128xbf16>, vector<384x128xf32> -> vector<384x128xf32>
    %c0_6 = arith.constant 0 : index
    %c0_7 = arith.constant 0 : index
    %6 = vector.load %arg5[%c0_6, %c0_7] : memref<384x128xf32, #tpu.memory_space<vmem>>, vector<384x128xf32>
    tpu.vector_store %arg5[%c0_6, %c0_7], %5 {strides = array<i32>} : memref<384x128xf32, #tpu.memory_space<vmem>>, vector<384x128xf32>,
    %7 = arith.truncf %2 : vector<384x128xf32> to vector<384x128xbf16>
    %c0_8 = arith.constant 0 : index
    %c0_9 = arith.constant 0 : index
    %8 = vector.load %arg4[%c0_8, %c0_9] : memref<384x128xbf16, #tpu.memory_space<vmem>>, vector<384x128xbf16>
    tpu.vector_store %arg4[%c0_8, %c0_9], %7 {strides = array<i32>} : memref<384x128xbf16, #tpu.memory_space<vmem>>, vector<384x128xbf16>,
    return
  }
  func.func @transform_0(%arg0: i32) -> (i32, i32) {
    %c0_i32 = arith.constant 0 : i32
    %c0_i32_0 = arith.constant 0 : i32
    return %arg0, %c0_i32 : i32, i32
  }
  func.func @transform_1(%arg0: i32) -> (i32, i32) {
    %c0_i32 = arith.constant 0 : i32
    %c0_i32_0 = arith.constant 0 : i32
    %c0_i32_1 = arith.constant 0 : i32
    return %c0_i32, %c0_i32_0 : i32, i32
  }
  func.func @transform_2(%arg0: i32) -> (i32, i32) {
    %c0_i32 = arith.constant 0 : i32
    %c0_i32_0 = arith.constant 0 : i32
    %c0_i32_1 = arith.constant 0 : i32
    return %c0_i32, %c0_i32_0 : i32, i32
  }
  func.func @transform_3(%arg0: i32) -> (i32, i32) {
    %c0_i32 = arith.constant 0 : i32
    %c0_i32_0 = arith.constant 0 : i32
    return %arg0, %c0_i32 : i32, i32
  }
  func.func @transform_4(%arg0: i32) -> (i32, i32) {
    %c0_i32 = arith.constant 0 : i32
    %c0_i32_0 = arith.constant 0 : i32
    return %arg0, %c0_i32 : i32, i32
  }
}

</mosaic_0001>

<llo_original>
// kernel: tpu_custom_call.1
$region0: #{tpu_custom_call.1}
  #allocation0 [shape = 'u32[]', space=smem, size = 0x4, offset = 0x4, fixed_abs, tag = 'smem constant byte address 0x4 - core index']
  #allocation1 [shape = 'u32[144,128]{1,0:T(1,128)}', space=vmem, size = 0x12000, scoped, tag = 'internal scratch']
  %s0 = inlined_call_operand.vmem [shape: bf16[384,16], index: 0, kind: input, shape index: {}]
  %s1 = inlined_call_operand.vmem [shape: bf16[16,128], index: 1, kind: input, shape index: {}]
  %s2 = inlined_call_operand.vmem [shape: bf16[128,128], index: 2, kind: input, shape index: {}]
  %s3 = inlined_call_operand.hbm [shape: bf16[384,128], index: 3, kind: output, shape index: {0}]
  %s4 = inlined_call_operand.hbm [shape: f32[384,128], index: 4, kind: output, shape index: {1}]
  %5 = xla_tuple %s3, %s4
  %s6 = sld [smem:[#allocation0]]
  $region30: #{tpu_custom_call.1} parent=0
    _
  %s8 = ssub.s32 1, %s6
  %s9 = scalar_select 0, %s8, %s6
  $region1: #{tpu_custom_call.1} parent=0
    #allocation2 [shape = 'u8[98304]{0}', space=vmem, size = 0x18000, scoped, tag = 'output window, operand 0, single buffered']
    #allocation3 [shape = 's32[1]{0}', space=sflag, size = 0x4, scoped, tag = 'scoped memory for tpu_custom_call.1']
    #allocation4 [shape = 'u8[196608]{0}', space=vmem, size = 0x30000, scoped, tag = 'output window, operand 1, single buffered']
    #allocation5 [shape = 's32[1]{0}', space=sflag, size = 0x4, scoped, tag = 'scoped memory for tpu_custom_call.1']
    %10 = vsyncpa [#allocation3], 0
    %11 = vsyncpa [#allocation5], 0
    // Predicated region
    $region2: #{tpu_custom_call.1} parent=1 // pred_check
      _
    $region3: #{tpu_custom_call.1} parent=1 // pred_check_branch
      %13 = sbr.rel (0) target = $region5
    $region4: #{tpu_custom_call.1} parent=1 // pred_region
      _
    $region5: #{tpu_custom_call.1} parent=1 // pred_fallthru
      _
    // Predicated region
    $region6: #{tpu_custom_call.1} parent=1 // pred_check
      _
    $region7: #{tpu_custom_call.1} parent=1 // pred_check_branch
      %15 = sbr.rel (0) target = $region9
    $region8: #{tpu_custom_call.1} parent=1 // pred_region
      _
    $region9: #{tpu_custom_call.1} parent=1 // pred_fallthru
      _
    // Predicated region
    $region10: #{tpu_custom_call.1} parent=1 // pred_check
      _
    $region11: #{tpu_custom_call.1} parent=1 // pred_check_branch
      %17 = sbr.rel (0) target = $region13
    $region12: #{tpu_custom_call.1} parent=1 // pred_region
      _
    $region13: #{tpu_custom_call.1} parent=1 // pred_fallthru
      _
    %v19 = vld [vmem:[%s0] sm:$0xf]
    %v20 = vld [vmem:[%s0 + $0x4] sm:$0xf]
    %v21 = vld [vmem:[%s0 + $0x8] sm:$0xf]
    %v22 = vld [vmem:[%s0 + $0xc] sm:$0xf]
    %v23 = vld [vmem:[%s0 + $0x10] sm:$0xf]
    %v24 = vld [vmem:[%s0 + $0x14] sm:$0xf]
    %v25 = vld [vmem:[%s0 + $0x18] sm:$0xf]
    %v26 = vld [vmem:[%s0 + $0x1c] sm:$0xf]
    %v27 = vld [vmem:[%s0 + $0x20] sm:$0xf]
    %v28 = vld [vmem:[%s0 + $0x24] sm:$0xf]
    %v29 = vld [vmem:[%s0 + $0x28] sm:$0xf]
    %v30 = vld [vmem:[%s0 + $0x2c] sm:$0xf]
    %v31 = vld [vmem:[%s0 + $0x30] sm:$0xf]
    %v32 = vld [vmem:[%s0 + $0x34] sm:$0xf]
    %v33 = vld [vmem:[%s0 + $0x38] sm:$0xf]
    %v34 = vld [vmem:[%s0 + $0x3c] sm:$0xf]
    %v35 = vld [vmem:[%s0 + $0x40] sm:$0xf]
    %v36 = vld [vmem:[%s0 + $0x44] sm:$0xf]
    %v37 = vld [vmem:[%s0 + $0x48] sm:$0xf]
    %v38 = vld [vmem:[%s0 + $0x4c] sm:$0xf]
    %v39 = vld [vmem:[%s0 + $0x50] sm:$0xf]
    %v40 = vld [vmem:[%s0 + $0x54] sm:$0xf]
    %v41 = vld [vmem:[%s0 + $0x58] sm:$0xf]
    %v42 = vld [vmem:[%s0 + $0x5c] sm:$0xf]
    %v43 = vld [vmem:[%s0 + $0x60] sm:$0xf]
    %v44 = vld [vmem:[%s0 + $0x64] sm:$0xf]
    %v45 = vld [vmem:[%s0 + $0x68] sm:$0xf]
    %v46 = vld [vmem:[%s0 + $0x6c] sm:$0xf]
    %v47 = vld [vmem:[%s0 + $0x70] sm:$0xf]
    %v48 = vld [vmem:[%s0 + $0x74] sm:$0xf]
    %v49 = vld [vmem:[%s0 + $0x78] sm:$0xf]
    %v50 = vld [vmem:[%s0 + $0x7c] sm:$0xf]
    %v51 = vld [vmem:[%s0 + $0x80] sm:$0xf]
    %v52 = vld [vmem:[%s0 + $0x84] sm:$0xf]
    %v53 = vld [vmem:[%s0 + $0x88] sm:$0xf]
    %v54 = vld [vmem:[%s0 + $0x8c] sm:$0xf]
    %v55 = vld [vmem:[%s0 + $0x90] sm:$0xf]
    %v56 = vld [vmem:[%s0 + $0x94] sm:$0xf]
    %v57 = vld [vmem:[%s0 + $0x98] sm:$0xf]
    %v58 = vld [vmem:[%s0 + $0x9c] sm:$0xf]
    %v59 = vld [vmem:[%s0 + $0xa0] sm:$0xf]
    %v60 = vld [vmem:[%s0 + $0xa4] sm:$0xf]
    %v61 = vld [vmem:[%s0 + $0xa8] sm:$0xf]
    %v62 = vld [vmem:[%s0 + $0xac] sm:$0xf]
    %v63 = vld [vmem:[%s0 + $0xb0] sm:$0xf]
    %v64 = vld [vmem:[%s0 + $0xb4] sm:$0xf]
    %v65 = vld [vmem:[%s0 + $0xb8] sm:$0xf]
    %v66 = vld [vmem:[%s0 + $0xbc] sm:$0xf]
    %v67 = vld [vmem:[%s1] sm:$0xf]
    %v68 = vld [vmem:[%s1 + $0x4] sm:$0xf]
    %v117 = vunpack.c.l.b16 %v19
    %v118 = vunpack.c.l.b16 %v20
    %v119 = vunpack.c.l.b16 %v21
    %v120 = vunpack.c.l.b16 %v22
    %v121 = vunpack.c.l.b16 %v23
    %v122 = vunpack.c.l.b16 %v24
    %v123 = vunpack.c.l.b16 %v25
    %v124 = vunpack.c.l.b16 %v26
    %v125 = vunpack.c.l.b16 %v27
    %v126 = vunpack.c.l.b16 %v28
    %v127 = vunpack.c.l.b16 %v29
    %v128 = vunpack.c.l.b16 %v30
    %v129 = vunpack.c.l.b16 %v31
    %v130 = vunpack.c.l.b16 %v32
    %v131 = vunpack.c.l.b16 %v33
    %v132 = vunpack.c.l.b16 %v34
    %v133 = vunpack.c.l.b16 %v35
    %v134 = vunpack.c.l.b16 %v36
    %v135 = vunpack.c.l.b16 %v37
    %v136 = vunpack.c.l.b16 %v38
    %v137 = vunpack.c.l.b16 %v39
    %v138 = vunpack.c.l.b16 %v40
    %v139 = vunpack.c.l.b16 %v41
    %v140 = vunpack.c.l.b16 %v42
    %v141 = vunpack.c.l.b16 %v43
    %v142 = vunpack.c.l.b16 %v44
    %v143 = vunpack.c.l.b16 %v45
    %v144 = vunpack.c.l.b16 %v46
    %v145 = vunpack.c.l.b16 %v47
    %v146 = vunpack.c.l.b16 %v48
    %v147 = vunpack.c.l.b16 %v49
    %v148 = vunpack.c.l.b16 %v50
    %v149 = vunpack.c.l.b16 %v51
    %v150 = vunpack.c.l.b16 %v52
    %v151 = vunpack.c.l.b16 %v53
    %v152 = vunpack.c.l.b16 %v54
    %v153 = vunpack.c.l.b16 %v55
    %v154 = vunpack.c.l.b16 %v56
    %v155 = vunpack.c.l.b16 %v57
    %v156 = vunpack.c.l.b16 %v58
    %v157 = vunpack.c.l.b16 %v59
    %v158 = vunpack.c.l.b16 %v60
    %v159 = vunpack.c.l.b16 %v61
    %v160 = vunpack.c.l.b16 %v62
    %v161 = vunpack.c.l.b16 %v63
    %v162 = vunpack.c.l.b16 %v64
    %v163 = vunpack.c.l.b16 %v65
    %v164 = vunpack.c.l.b16 %v66
    %v165 = vpack.c.b16 %v118, %v117
    %v166 = vpack.c.b16 %v120, %v119
    %v167 = vpack.c.b16 %v122, %v121
    %v168 = vpack.c.b16 %v124, %v123
    %v169 = vpack.c.b16 %v126, %v125
    %v170 = vpack.c.b16 %v128, %v127
    %v171 = vpack.c.b16 %v130, %v129
    %v172 = vpack.c.b16 %v132, %v131
    %v173 = vpack.c.b16 %v134, %v133
    %v174 = vpack.c.b16 %v136, %v135
    %v175 = vpack.c.b16 %v138, %v137
    %v176 = vpack.c.b16 %v140, %v139
    %v177 = vpack.c.b16 %v142, %v141
    %v178 = vpack.c.b16 %v144, %v143
    %v179 = vpack.c.b16 %v146, %v145
    %v180 = vpack.c.b16 %v148, %v147
    %v181 = vpack.c.b16 %v150, %v149
    %v182 = vpack.c.b16 %v152, %v151
    %v183 = vpack.c.b16 %v154, %v153
    %v184 = vpack.c.b16 %v156, %v155
    %v185 = vpack.c.b16 %v158, %v157
    %v186 = vpack.c.b16 %v160, %v159
    %v187 = vpack.c.b16 %v162, %v161
    %v188 = vpack.c.b16 %v164, %v163
    %v191 = vunpack.c.l.b16 %v67
    %v192 = vunpack.c.l.b16 %v68
    %v193 = vpack.c.b16 %v192, %v191
    %vm195 = vcmask 130048
    %v197 = vsel %vm195, %v165, 0
    %v200 = vsel %vm195, %v166, 0
    %v203 = vsel %vm195, %v167, 0
    %v206 = vsel %vm195, %v168, 0
    %v209 = vsel %vm195, %v169, 0
    %v212 = vsel %vm195, %v170, 0
    %v215 = vsel %vm195, %v171, 0
    %v218 = vsel %vm195, %v172, 0
    %v221 = vsel %vm195, %v173, 0
    %v224 = vsel %vm195, %v174, 0
    %v227 = vsel %vm195, %v175, 0
    %v230 = vsel %vm195, %v176, 0
    %v233 = vsel %vm195, %v177, 0
    %v236 = vsel %vm195, %v178, 0
    %v239 = vsel %vm195, %v179, 0
    %v242 = vsel %vm195, %v180, 0
    %v245 = vsel %vm195, %v181, 0
    %v248 = vsel %vm195, %v182, 0
    %v251 = vsel %vm195, %v183, 0
    %v254 = vsel %vm195, %v184, 0
    %v257 = vsel %vm195, %v185, 0
    %v260 = vsel %vm195, %v186, 0
    %v263 = vsel %vm195, %v187, 0
    %v266 = vsel %vm195, %v188, 0
    %268 = vmatprep.subr.bf16.mxu0 0
    %269 = vmatpush1.bf16.msra.mxu0 %v193
    %270 = vmatprep.subr.bf16.mxu0 0
    %271 = vmatpush1.bf16.msra.mxu0 0
    %272 = vmatprep.subr.bf16.mxu0 0
    %273 = vmatpush1.bf16.msra.mxu0 0
    %274 = vmatprep.subr.bf16.mxu0 0
    %275 = vmatpush1.bf16.msra.mxu0 0
    %276 = vmatprep.subr.bf16.mxu0 0
    %277 = vmatpush1.bf16.msra.mxu0 0
    %278 = vmatprep.subr.bf16.mxu0 0
    %279 = vmatpush1.bf16.msra.mxu0 0
    %280 = vmatprep.subr.bf16.mxu0 0
    %281 = vmatpush1.bf16.msra.mxu0 0
    %282 = vmatprep.subr.bf16.mxu0 0
    %283 = vmatpush1.bf16.msra.mxu0 0
    %284 = vmatprep.subr.bf16.mxu0 0
    %285 = vmatpush1.bf16.msra.mxu0 0
    %286 = vmatprep.subr.bf16.mxu0 0
    %287 = vmatpush1.bf16.msra.mxu0 0
    %288 = vmatprep.subr.bf16.mxu0 0
    %289 = vmatpush1.bf16.msra.mxu0 0
    %290 = vmatprep.subr.bf16.mxu0 0
    %291 = vmatpush1.bf16.msra.mxu0 0
    %292 = vmatprep.subr.bf16.mxu0 0
    %293 = vmatpush1.bf16.msra.mxu0 0
    %294 = vmatprep.subr.bf16.mxu0 0
    %295 = vmatpush1.bf16.msra.mxu0 0
    %296 = vmatprep.subr.bf16.mxu0 0
    %297 = vmatpush1.bf16.msra.mxu0 0
    %298 = vmatprep.subr.bf16.mxu0 0
    %299 = vmatpush1.bf16.msra.mxu0 0
    %300 = vmatprep.mubr.bf16.mxu0 0
    %301 = vmatmul.mubr.bf16.gmra.mrb[0].mxu0 %v197
    %v302 = vpop.f32.mrb[0].mxu0
    %v303 = vadd.f32 0.0, %v302
    %v304 = vpop.f32.mrb[0].mxu0
    %v305 = vpop.f32.mrb[0].mxu0
    %v306 = vadd.f32 0.0, %v305
    %v307 = vpop.f32.mrb[0].mxu0
    %308 = vmatprep.mubr.bf16.mxu0 0
    %309 = vmatmul.mubr.bf16.gmra.mrb[0].mxu0 %v200
    %v310 = vpop.f32.mrb[0].mxu0
    %v311 = vadd.f32 0.0, %v310
    %v312 = vpop.f32.mrb[0].mxu0
    %v313 = vpop.f32.mrb[0].mxu0
    %v314 = vadd.f32 0.0, %v313
    %v315 = vpop.f32.mrb[0].mxu0
    %316 = vmatprep.mubr.bf16.mxu0 0
    %317 = vmatmul.mubr.bf16.gmra.mrb[0].mxu0 %v203
    %v318 = vpop.f32.mrb[0].mxu0
    %v319 = vadd.f32 0.0, %v318
    %v320 = vpop.f32.mrb[0].mxu0
    %v321 = vpop.f32.mrb[0].mxu0
    %v322 = vadd.f32 0.0, %v321
    %v323 = vpop.f32.mrb[0].mxu0
    %324 = vmatprep.mubr.bf16.mxu0 0
    %325 = vmatmul.mubr.bf16.gmra.mrb[0].mxu0 %v206
    %v326 = vpop.f32.mrb[0].mxu0
    %v327 = vadd.f32 0.0, %v326
    %v328 = vpop.f32.mrb[0].mxu0
    %v329 = vpop.f32.mrb[0].mxu0
    %v330 = vadd.f32 0.0, %v329
    %v331 = vpop.f32.mrb[0].mxu0
    %332 = vmatprep.mubr.bf16.mxu0 0
    %333 = vmatmul.mubr.bf16.gmra.mrb[0].mxu0 %v209
    %v334 = vpop.f32.mrb[0].mxu0
    %v335 = vadd.f32 0.0, %v334
    %v336 = vpop.f32.mrb[0].mxu0
    %v337 = vpop.f32.mrb[0].mxu0
    %v338 = vadd.f32 0.0, %v337
    %v339 = vpop.f32.mrb[0].mxu0
    %340 = vmatprep.mubr.bf16.mxu0 0
    %341 = vmatmul.mubr.bf16.gmra.mrb[0].mxu0 %v212
    %v342 = vpop.f32.mrb[0].mxu0
    %v343 = vadd.f32 0.0, %v342
    %v344 = vpop.f32.mrb[0].mxu0
    %v345 = vpop.f32.mrb[0].mxu0
    %v346 = vadd.f32 0.0, %v345
    %v347 = vpop.f32.mrb[0].mxu0
    %348 = vmatprep.mubr.bf16.mxu0 0
    %349 = vmatmul.mubr.bf16.gmra.mrb[0].mxu0 %v215
    %v350 = vpop.f32.mrb[0].mxu0
    %v351 = vadd.f32 0.0, %v350
    %v352 = vpop.f32.mrb[0].mxu0
    %v353 = vpop.f32.mrb[0].mxu0
    %v354 = vadd.f32 0.0, %v353
    %v355 = vpop.f32.mrb[0].mxu0
    %356 = vmatprep.mubr.bf16.mxu0 0
    %357 = vmatmul.mubr.bf16.gmra.mrb[0].mxu0 %v218
    %v358 = vpop.f32.mrb[0].mxu0
    %v359 = vadd.f32 0.0, %v358
    %v360 = vpop.f32.mrb[0].mxu0
    %v361 = vpop.f32.mrb[0].mxu0
    %v362 = vadd.f32 0.0, %v361
    %v363 = vpop.f32.mrb[0].mxu0
    %364 = vmatprep.mubr.bf16.mxu0 0
    %365 = vmatmul.mubr.bf16.gmra.mrb[0].mxu0 %v221
    %v366 = vpop.f32.mrb[0].mxu0
    %v367 = vadd.f32 0.0, %v366
    %v368 = vpop.f32.mrb[0].mxu0
    %v369 = vpop.f32.mrb[0].mxu0
    %v370 = vadd.f32 0.0, %v369
    %v371 = vpop.f32.mrb[0].mxu0
    %372 = vmatprep.mubr.bf16.mxu0 0
    %373 = vmatmul.mubr.bf16.gmra.mrb[0].mxu0 %v224
    %v374 = vpop.f32.mrb[0].mxu0
    %v375 = vadd.f32 0.0, %v374
    %v376 = vpop.f32.mrb[0].mxu0
    %v377 = vpop.f32.mrb[0].mxu0
    %v378 = vadd.f32 0.0, %v377
    %v379 = vpop.f32.mrb[0].mxu0
    %380 = vmatprep.mubr.bf16.mxu0 0
    %381 = vmatmul.mubr.bf16.gmra.mrb[0].mxu0 %v227
    %v382 = vpop.f32.mrb[0].mxu0
    %v383 = vadd.f32 0.0, %v382
    %v384 = vpop.f32.mrb[0].mxu0
    %v385 = vpop.f32.mrb[0].mxu0
    %v386 = vadd.f32 0.0, %v385
    %v387 = vpop.f32.mrb[0].mxu0
    %388 = vmatprep.mubr.bf16.mxu0 0
    %389 = vmatmul.mubr.bf16.gmra.mrb[0].mxu0 %v230
    %v390 = vpop.f32.mrb[0].mxu0
    %v391 = vadd.f32 0.0, %v390
    %v392 = vpop.f32.mrb[0].mxu0
    %v393 = vpop.f32.mrb[0].mxu0
    %v394 = vadd.f32 0.0, %v393
    %v395 = vpop.f32.mrb[0].mxu0
    %396 = vmatprep.mubr.bf16.mxu0 0
    %397 = vmatmul.mubr.bf16.gmra.mrb[0].mxu0 %v233
    %v398 = vpop.f32.mrb[0].mxu0
    %v399 = vadd.f32 0.0, %v398
    %v400 = vpop.f32.mrb[0].mxu0
    %v401 = vpop.f32.mrb[0].mxu0
    %v402 = vadd.f32 0.0, %v401
    %v403 = vpop.f32.mrb[0].mxu0
    %404 = vmatprep.mubr.bf16.mxu0 0
    %405 = vmatmul.mubr.bf16.gmra.mrb[0].mxu0 %v236
    %v406 = vpop.f32.mrb[0].mxu0
    %v407 = vadd.f32 0.0, %v406
    %v408 = vpop.f32.mrb[0].mxu0
    %v409 = vpop.f32.mrb[0].mxu0
    %v410 = vadd.f32 0.0, %v409
    %v411 = vpop.f32.mrb[0].mxu0
    %412 = vmatprep.mubr.bf16.mxu0 0
    %413 = vmatmul.mubr.bf16.gmra.mrb[0].mxu0 %v239
    %v414 = vpop.f32.mrb[0].mxu0
    %v415 = vadd.f32 0.0, %v414
    %v416 = vpop.f32.mrb[0].mxu0
    %v417 = vpop.f32.mrb[0].mxu0
    %v418 = vadd.f32 0.0, %v417
    %v419 = vpop.f32.mrb[0].mxu0
    %420 = vmatprep.mubr.bf16.mxu0 0
    %421 = vmatmul.mubr.bf16.gmra.mrb[0].mxu0 %v242
    %v422 = vpop.f32.mrb[0].mxu0
    %v423 = vadd.f32 0.0, %v422
    %v424 = vpop.f32.mrb[0].mxu0
    %v425 = vpop.f32.mrb[0].mxu0
    %v426 = vadd.f32 0.0, %v425
    %v427 = vpop.f32.mrb[0].mxu0
    %428 = vmatprep.mubr.bf16.mxu0 0
    %429 = vmatmul.mubr.bf16.gmra.mrb[0].mxu0 %v245
    %v430 = vpop.f32.mrb[0].mxu0
    %v431 = vadd.f32 0.0, %v430
    %v432 = vpop.f32.mrb[0].mxu0
    %v433 = vpop.f32.mrb[0].mxu0
    %v434 = vadd.f32 0.0, %v433
    %v435 = vpop.f32.mrb[0].mxu0
    %436 = vmatprep.mubr.bf16.mxu0 0
    %437 = vmatmul.mubr.bf16.gmra.mrb[0].mxu0 %v248
    %v438 = vpop.f32.mrb[0].mxu0
    %v439 = vadd.f32 0.0, %v438
    %v440 = vpop.f32.mrb[0].mxu0
    %v441 = vpop.f32.mrb[0].mxu0
    %v442 = vadd.f32 0.0, %v441
    %v443 = vpop.f32.mrb[0].mxu0
    %444 = vmatprep.mubr.bf16.mxu0 0
    %445 = vmatmul.mubr.bf16.gmra.mrb[0].mxu0 %v251
    %v446 = vpop.f32.mrb[0].mxu0
    %v447 = vadd.f32 0.0, %v446
    %v448 = vpop.f32.mrb[0].mxu0
    %v449 = vpop.f32.mrb[0].mxu0
    %v450 = vadd.f32 0.0, %v449
    %v451 = vpop.f32.mrb[0].mxu0
    %452 = vmatprep.mubr.bf16.mxu0 0
    %453 = vmatmul.mubr.bf16.gmra.mrb[0].mxu0 %v254
    %v454 = vpop.f32.mrb[0].mxu0
    %v455 = vadd.f32 0.0, %v454
    %v456 = vpop.f32.mrb[0].mxu0
    %v457 = vpop.f32.mrb[0].mxu0
    %v458 = vadd.f32 0.0, %v457
    %v459 = vpop.f32.mrb[0].mxu0
    %460 = vmatprep.mubr.bf16.mxu0 0
    %461 = vmatmul.mubr.bf16.gmra.mrb[0].mxu0 %v257
    %v462 = vpop.f32.mrb[0].mxu0
    %v463 = vadd.f32 0.0, %v462
    %v464 = vpop.f32.mrb[0].mxu0
    %v465 = vpop.f32.mrb[0].mxu0
    %v466 = vadd.f32 0.0, %v465
    %v467 = vpop.f32.mrb[0].mxu0
    %468 = vmatprep.mubr.bf16.mxu0 0
    %469 = vmatmul.mubr.bf16.gmra.mrb[0].mxu0 %v260
    %v470 = vpop.f32.mrb[0].mxu0
    %v471 = vadd.f32 0.0, %v470
    %v472 = vpop.f32.mrb[0].mxu0
    %v473 = vpop.f32.mrb[0].mxu0
    %v474 = vadd.f32 0.0, %v473
    %v475 = vpop.f32.mrb[0].mxu0
    %476 = vmatprep.mubr.bf16.mxu0 0
    %477 = vmatmul.mubr.bf16.gmra.mrb[0].mxu0 %v263
    %v478 = vpop.f32.mrb[0].mxu0
    %v479 = vadd.f32 0.0, %v478
    %v480 = vpop.f32.mrb[0].mxu0
    %v481 = vpop.f32.mrb[0].mxu0
    %v482 = vadd.f32 0.0, %v481
    %v483 = vpop.f32.mrb[0].mxu0
    %484 = vmatprep.mubr.bf16.mxu0 0
    %485 = vmatmul.mubr.bf16.gmra.mrb[0].mxu0 %v266
    %v486 = vpop.f32.mrb[0].mxu0
    %v487 = vadd.f32 0.0, %v486
    %v488 = vpop.f32.mrb[0].mxu0
    %v489 = vpop.f32.mrb[0].mxu0
    %v490 = vadd.f32 0.0, %v489
    %v491 = vpop.f32.mrb[0].mxu0
    %492 = vdwg.mxu0
    %v493 = vpack.c.bf16 %v306, %v303
    %v494 = vpack.c.bf16 %v314, %v311
    %v495 = vpack.c.bf16 %v322, %v319
    %v496 = vpack.c.bf16 %v330, %v327
    %v497 = vpack.c.bf16 %v338, %v335
    %v498 = vpack.c.bf16 %v346, %v343
    %v499 = vpack.c.bf16 %v354, %v351
    %v500 = vpack.c.bf16 %v362, %v359
    %v501 = vpack.c.bf16 %v370, %v367
    %v502 = vpack.c.bf16 %v378, %v375
    %v503 = vpack.c.bf16 %v386, %v383
    %v504 = vpack.c.bf16 %v394, %v391
    %v505 = vpack.c.bf16 %v402, %v399
    %v506 = vpack.c.bf16 %v410, %v407
    %v507 = vpack.c.bf16 %v418, %v415
    %v508 = vpack.c.bf16 %v426, %v423
    %v509 = vpack.c.bf16 %v434, %v431
    %v510 = vpack.c.bf16 %v442, %v439
    %v511 = vpack.c.bf16 %v450, %v447
    %v512 = vpack.c.bf16 %v458, %v455
    %v513 = vpack.c.bf16 %v466, %v463
    %v514 = vpack.c.bf16 %v474, %v471
    %v515 = vpack.c.bf16 %v482, %v479
    %v516 = vpack.c.bf16 %v490, %v487
    %v517 = vld [vmem:[%s2] sm:$0xf]
    %v518 = vld [vmem:[%s2 + $0x4] sm:$0xf]
    %v519 = vld [vmem:[%s2 + $0x8] sm:$0xf]
    %v520 = vld [vmem:[%s2 + $0xc] sm:$0xf]
    %v521 = vld [vmem:[%s2 + $0x10] sm:$0xf]
    %v522 = vld [vmem:[%s2 + $0x14] sm:$0xf]
    %v523 = vld [vmem:[%s2 + $0x18] sm:$0xf]
    %v524 = vld [vmem:[%s2 + $0x1c] sm:$0xf]
    %v525 = vld [vmem:[%s2 + $0x20] sm:$0xf]
    %v526 = vld [vmem:[%s2 + $0x24] sm:$0xf]
    %v527 = vld [vmem:[%s2 + $0x28] sm:$0xf]
    %v528 = vld [vmem:[%s2 + $0x2c] sm:$0xf]
    %v529 = vld [vmem:[%s2 + $0x30] sm:$0xf]
    %v530 = vld [vmem:[%s2 + $0x34] sm:$0xf]
    %v531 = vld [vmem:[%s2 + $0x38] sm:$0xf]
    %v532 = vld [vmem:[%s2 + $0x3c] sm:$0xf]
    %v549 = vunpack.c.l.b16 %v517
    %v550 = vunpack.c.l.b16 %v518
    %v551 = vunpack.c.l.b16 %v519
    %v552 = vunpack.c.l.b16 %v520
    %v553 = vunpack.c.l.b16 %v521
    %v554 = vunpack.c.l.b16 %v522
    %v555 = vunpack.c.l.b16 %v523
    %v556 = vunpack.c.l.b16 %v524
    %v557 = vunpack.c.l.b16 %v525
    %v558 = vunpack.c.l.b16 %v526
    %v559 = vunpack.c.l.b16 %v527
    %v560 = vunpack.c.l.b16 %v528
    %v561 = vunpack.c.l.b16 %v529
    %v562 = vunpack.c.l.b16 %v530
    %v563 = vunpack.c.l.b16 %v531
    %v564 = vunpack.c.l.b16 %v532
    %v565 = vpack.c.b16 %v550, %v549
    %v566 = vpack.c.b16 %v552, %v551
    %v567 = vpack.c.b16 %v554, %v553
    %v568 = vpack.c.b16 %v556, %v555
    %v569 = vpack.c.b16 %v558, %v557
    %v570 = vpack.c.b16 %v560, %v559
    %v571 = vpack.c.b16 %v562, %v561
    %v572 = vpack.c.b16 %v564, %v563
    %581 = vmatprep.subr.bf16.mxu0 0
    %582 = vmatpush1.bf16.msra.mxu0 %v565
    %583 = vmatprep.subr.bf16.mxu0 0
    %584 = vmatpush1.bf16.msra.mxu0 %v566
    %585 = vmatprep.subr.bf16.mxu0 0
    %586 = vmatpush1.bf16.msra.mxu0 %v567
    %587 = vmatprep.subr.bf16.mxu0 0
    %588 = vmatpush1.bf16.msra.mxu0 %v568
    %589 = vmatprep.subr.bf16.mxu0 0
    %590 = vmatpush1.bf16.msra.mxu0 %v569
    %591 = vmatprep.subr.bf16.mxu0 0
    %592 = vmatpush1.bf16.msra.mxu0 %v570
    %593 = vmatprep.subr.bf16.mxu0 0
    %594 = vmatpush1.bf16.msra.mxu0 %v571
    %595 = vmatprep.subr.bf16.mxu0 0
    %596 = vmatpush1.bf16.msra.mxu0 %v572
    %597 = vmatprep.subr.bf16.mxu0 0
    %598 = vmatpush1.bf16.msra.mxu0 0
    %599 = vmatprep.subr.bf16.mxu0 0
    %600 = vmatpush1.bf16.msra.mxu0 0
    %601 = vmatprep.subr.bf16.mxu0 0
    %602 = vmatpush1.bf16.msra.mxu0 0
    %603 = vmatprep.subr.bf16.mxu0 0
    %604 = vmatpush1.bf16.msra.mxu0 0
    %605 = vmatprep.subr.bf16.mxu0 0
    %606 = vmatpush1.bf16.msra.mxu0 0
    %607 = vmatprep.subr.bf16.mxu0 0
    %608 = vmatpush1.bf16.msra.mxu0 0
    %609 = vmatprep.subr.bf16.mxu0 0
    %610 = vmatpush1.bf16.msra.mxu0 0
    %611 = vmatprep.subr.bf16.mxu0 0
    %612 = vmatpush1.bf16.msra.mxu0 0
    %613 = vmatprep.mubr.bf16.mxu0 0
    %614 = vmatmul.mubr.bf16.gmra.mrb[0].mxu0 %v493
    %v615 = vpop.f32.mrb[0].mxu0
    %v616 = vadd.f32 0.0, %v615
    %v617 = vpop.f32.mrb[0].mxu0
    %v618 = vpop.f32.mrb[0].mxu0
    %v619 = vadd.f32 0.0, %v618
    %v620 = vpop.f32.mrb[0].mxu0
    %621 = vmatprep.mubr.bf16.mxu0 0
    %622 = vmatmul.mubr.bf16.gmra.mrb[0].mxu0 %v494
    %v623 = vpop.f32.mrb[0].mxu0
    %v624 = vadd.f32 0.0, %v623
    %v625 = vpop.f32.mrb[0].mxu0
    %v626 = vpop.f32.mrb[0].mxu0
    %v627 = vadd.f32 0.0, %v626
    %v628 = vpop.f32.mrb[0].mxu0
    %629 = vmatprep.mubr.bf16.mxu0 0
    %630 = vmatmul.mubr.bf16.gmra.mrb[0].mxu0 %v495
    %v631 = vpop.f32.mrb[0].mxu0
    %v632 = vadd.f32 0.0, %v631
    %v633 = vpop.f32.mrb[0].mxu0
    %v634 = vpop.f32.mrb[0].mxu0
    %v635 = vadd.f32 0.0, %v634
    %v636 = vpop.f32.mrb[0].mxu0
    %637 = vmatprep.mubr.bf16.mxu0 0
    %638 = vmatmul.mubr.bf16.gmra.mrb[0].mxu0 %v496
    %v639 = vpop.f32.mrb[0].mxu0
    %v640 = vadd.f32 0.0, %v639
    %v641 = vpop.f32.mrb[0].mxu0
    %v642 = vpop.f32.mrb[0].mxu0
    %v643 = vadd.f32 0.0, %v642
    %v644 = vpop.f32.mrb[0].mxu0
    %645 = vmatprep.mubr.bf16.mxu0 0
    %646 = vmatmul.mubr.bf16.gmra.mrb[0].mxu0 %v497
    %v647 = vpop.f32.mrb[0].mxu0
    %v648 = vadd.f32 0.0, %v647
    %v649 = vpop.f32.mrb[0].mxu0
    %v650 = vpop.f32.mrb[0].mxu0
    %v651 = vadd.f32 0.0, %v650
    %v652 = vpop.f32.mrb[0].mxu0
    %653 = vmatprep.mubr.bf16.mxu0 0
    %654 = vmatmul.mubr.bf16.gmra.mrb[0].mxu0 %v498
    %v655 = vpop.f32.mrb[0].mxu0
    %v656 = vadd.f32 0.0, %v655
    %v657 = vpop.f32.mrb[0].mxu0
    %v658 = vpop.f32.mrb[0].mxu0
    %v659 = vadd.f32 0.0, %v658
    %v660 = vpop.f32.mrb[0].mxu0
    %661 = vmatprep.mubr.bf16.mxu0 0
    %662 = vmatmul.mubr.bf16.gmra.mrb[0].mxu0 %v499
    %v663 = vpop.f32.mrb[0].mxu0
    %v664 = vadd.f32 0.0, %v663
    %v665 = vpop.f32.mrb[0].mxu0
    %v666 = vpop.f32.mrb[0].mxu0
    %v667 = vadd.f32 0.0, %v666
    %v668 = vpop.f32.mrb[0].mxu0
    %669 = vmatprep.mubr.bf16.mxu0 0
    %670 = vmatmul.mubr.bf16.gmra.mrb[0].mxu0 %v500
    %v671 = vpop.f32.mrb[0].mxu0
    %v672 = vadd.f32 0.0, %v671
    %v673 = vpop.f32.mrb[0].mxu0
    %v674 = vpop.f32.mrb[0].mxu0
    %v675 = vadd.f32 0.0, %v674
    %v676 = vpop.f32.mrb[0].mxu0
    %677 = vmatprep.mubr.bf16.mxu0 0
    %678 = vmatmul.mubr.bf16.gmra.mrb[0].mxu0 %v501
    %v679 = vpop.f32.mrb[0].mxu0
    %v680 = vadd.f32 0.0, %v679
    %v681 = vpop.f32.mrb[0].mxu0
    %v682 = vpop.f32.mrb[0].mxu0
    %v683 = vadd.f32 0.0, %v682
    %v684 = vpop.f32.mrb[0].mxu0
    %685 = vmatprep.mubr.bf16.mxu0 0
    %686 = vmatmul.mubr.bf16.gmra.mrb[0].mxu0 %v502
    %v687 = vpop.f32.mrb[0].mxu0
    %v688 = vadd.f32 0.0, %v687
    %v689 = vpop.f32.mrb[0].mxu0
    %v690 = vpop.f32.mrb[0].mxu0
    %v691 = vadd.f32 0.0, %v690
    %v692 = vpop.f32.mrb[0].mxu0
    %693 = vmatprep.mubr.bf16.mxu0 0
    %694 = vmatmul.mubr.bf16.gmra.mrb[0].mxu0 %v503
    %v695 = vpop.f32.mrb[0].mxu0
    %v696 = vadd.f32 0.0, %v695
    %v697 = vpop.f32.mrb[0].mxu0
    %v698 = vpop.f32.mrb[0].mxu0
    %v699 = vadd.f32 0.0, %v698
    %v700 = vpop.f32.mrb[0].mxu0
    %701 = vmatprep.mubr.bf16.mxu0 0
    %702 = vmatmul.mubr.bf16.gmra.mrb[0].mxu0 %v504
    %v703 = vpop.f32.mrb[0].mxu0
    %v704 = vadd.f32 0.0, %v703
    %v705 = vpop.f32.mrb[0].mxu0
    %v706 = vpop.f32.mrb[0].mxu0
    %v707 = vadd.f32 0.0, %v706
    %v708 = vpop.f32.mrb[0].mxu0
    %709 = vmatprep.mubr.bf16.mxu0 0
    %710 = vmatmul.mubr.bf16.gmra.mrb[0].mxu0 %v505
    %v711 = vpop.f32.mrb[0].mxu0
    %v712 = vadd.f32 0.0, %v711
    %v713 = vpop.f32.mrb[0].mxu0
    %v714 = vpop.f32.mrb[0].mxu0
    %v715 = vadd.f32 0.0, %v714
    %v716 = vpop.f32.mrb[0].mxu0
    %717 = vmatprep.mubr.bf16.mxu0 0
    %718 = vmatmul.mubr.bf16.gmra.mrb[0].mxu0 %v506
    %v719 = vpop.f32.mrb[0].mxu0
    %v720 = vadd.f32 0.0, %v719
    %v721 = vpop.f32.mrb[0].mxu0
    %v722 = vpop.f32.mrb[0].mxu0
    %v723 = vadd.f32 0.0, %v722
    %v724 = vpop.f32.mrb[0].mxu0
    %725 = vmatprep.mubr.bf16.mxu0 0
    %726 = vmatmul.mubr.bf16.gmra.mrb[0].mxu0 %v507
    %v727 = vpop.f32.mrb[0].mxu0
    %v728 = vadd.f32 0.0, %v727
    %v729 = vpop.f32.mrb[0].mxu0
    %v730 = vpop.f32.mrb[0].mxu0
    %v731 = vadd.f32 0.0, %v730
    %v732 = vpop.f32.mrb[0].mxu0
    %733 = vmatprep.mubr.bf16.mxu0 0
    %734 = vmatmul.mubr.bf16.gmra.mrb[0].mxu0 %v508
    %v735 = vpop.f32.mrb[0].mxu0
    %v736 = vadd.f32 0.0, %v735
    %v737 = vpop.f32.mrb[0].mxu0
    %v738 = vpop.f32.mrb[0].mxu0
    %v739 = vadd.f32 0.0, %v738
    %v740 = vpop.f32.mrb[0].mxu0
    %741 = vmatprep.mubr.bf16.mxu0 0
    %742 = vmatmul.mubr.bf16.gmra.mrb[0].mxu0 %v509
    %v743 = vpop.f32.mrb[0].mxu0
    %v744 = vadd.f32 0.0, %v743
    %v745 = vpop.f32.mrb[0].mxu0
    %v746 = vpop.f32.mrb[0].mxu0
    %v747 = vadd.f32 0.0, %v746
    %v748 = vpop.f32.mrb[0].mxu0
    %749 = vmatprep.mubr.bf16.mxu0 0
    %750 = vmatmul.mubr.bf16.gmra.mrb[0].mxu0 %v510
    %v751 = vpop.f32.mrb[0].mxu0
    %v752 = vadd.f32 0.0, %v751
    %v753 = vpop.f32.mrb[0].mxu0
    %v754 = vpop.f32.mrb[0].mxu0
    %v755 = vadd.f32 0.0, %v754
    %v756 = vpop.f32.mrb[0].mxu0
    %757 = vmatprep.mubr.bf16.mxu0 0
    %758 = vmatmul.mubr.bf16.gmra.mrb[0].mxu0 %v511
    %v759 = vpop.f32.mrb[0].mxu0
    %v760 = vadd.f32 0.0, %v759
    %v761 = vpop.f32.mrb[0].mxu0
    %v762 = vpop.f32.mrb[0].mxu0
    %v763 = vadd.f32 0.0, %v762
    %v764 = vpop.f32.mrb[0].mxu0
    %765 = vmatprep.mubr.bf16.mxu0 0
    %766 = vmatmul.mubr.bf16.gmra.mrb[0].mxu0 %v512
    %v767 = vpop.f32.mrb[0].mxu0
    %v768 = vadd.f32 0.0, %v767
    %v769 = vpop.f32.mrb[0].mxu0
    %v770 = vpop.f32.mrb[0].mxu0
    %v771 = vadd.f32 0.0, %v770
    %v772 = vpop.f32.mrb[0].mxu0
    %773 = vmatprep.mubr.bf16.mxu0 0
    %774 = vmatmul.mubr.bf16.gmra.mrb[0].mxu0 %v513
    %v775 = vpop.f32.mrb[0].mxu0
    %v776 = vadd.f32 0.0, %v775
    %v777 = vpop.f32.mrb[0].mxu0
    %v778 = vpop.f32.mrb[0].mxu0
    %v779 = vadd.f32 0.0, %v778
    %v780 = vpop.f32.mrb[0].mxu0
    %781 = vmatprep.mubr.bf16.mxu0 0
    %782 = vmatmul.mubr.bf16.gmra.mrb[0].mxu0 %v514
    %v783 = vpop.f32.mrb[0].mxu0
    %v784 = vadd.f32 0.0, %v783
    %v785 = vpop.f32.mrb[0].mxu0
    %v786 = vpop.f32.mrb[0].mxu0
    %v787 = vadd.f32 0.0, %v786
    %v788 = vpop.f32.mrb[0].mxu0
    %789 = vmatprep.mubr.bf16.mxu0 0
    %790 = vmatmul.mubr.bf16.gmra.mrb[0].mxu0 %v515
    %v791 = vpop.f32.mrb[0].mxu0
    %v792 = vadd.f32 0.0, %v791
    %v793 = vpop.f32.mrb[0].mxu0
    %v794 = vpop.f32.mrb[0].mxu0
    %v795 = vadd.f32 0.0, %v794
    %v796 = vpop.f32.mrb[0].mxu0
    %797 = vmatprep.mubr.bf16.mxu0 0
    %798 = vmatmul.mubr.bf16.gmra.mrb[0].mxu0 %v516
    %v799 = vpop.f32.mrb[0].mxu0
    %v800 = vadd.f32 0.0, %v799
    %v801 = vpop.f32.mrb[0].mxu0
    %v802 = vpop.f32.mrb[0].mxu0
    %v803 = vadd.f32 0.0, %v802
    %v804 = vpop.f32.mrb[0].mxu0
    %805 = vdwg.mxu0
    %806 = vst [vmem:[#allocation4] sm:$0xff] %v616
    %807 = vst [vmem:[#allocation4 + $0x8] sm:$0xff] %v619
    %808 = vst [vmem:[#allocation4 + $0x10] sm:$0xff] %v624
    %809 = vst [vmem:[#allocation4 + $0x18] sm:$0xff] %v627
    %810 = vst [vmem:[#allocation4 + $0x20] sm:$0xff] %v632
    %811 = vst [vmem:[#allocation4 + $0x28] sm:$0xff] %v635
    %812 = vst [vmem:[#allocation4 + $0x30] sm:$0xff] %v640
    %813 = vst [vmem:[#allocation4 + $0x38] sm:$0xff] %v643
    %814 = vst [vmem:[#allocation4 + $0x40] sm:$0xff] %v648
    %815 = vst [vmem:[#allocation4 + $0x48] sm:$0xff] %v651
    %816 = vst [vmem:[#allocation4 + $0x50] sm:$0xff] %v656
    %817 = vst [vmem:[#allocation4 + $0x58] sm:$0xff] %v659
    %818 = vst [vmem:[#allocation4 + $0x60] sm:$0xff] %v664
    %819 = vst [vmem:[#allocation4 + $0x68] sm:$0xff] %v667
    %820 = vst [vmem:[#allocation4 + $0x70] sm:$0xff] %v672
    %821 = vst [vmem:[#allocation4 + $0x78] sm:$0xff] %v675
    %822 = vst [vmem:[#allocation4 + $0x80] sm:$0xff] %v680
    %823 = vst [vmem:[#allocation4 + $0x88] sm:$0xff] %v683
    %824 = vst [vmem:[#allocation4 + $0x90] sm:$0xff] %v688
    %825 = vst [vmem:[#allocation4 + $0x98] sm:$0xff] %v691
    %826 = vst [vmem:[#allocation4 + $0xa0] sm:$0xff] %v696
    %827 = vst [vmem:[#allocation4 + $0xa8] sm:$0xff] %v699
    %828 = vst [vmem:[#allocation4 + $0xb0] sm:$0xff] %v704
    %829 = vst [vmem:[#allocation4 + $0xb8] sm:$0xff] %v707
    %830 = vst [vmem:[#allocation4 + $0xc0] sm:$0xff] %v712
    %831 = vst [vmem:[#allocation4 + $0xc8] sm:$0xff] %v715
    %832 = vst [vmem:[#allocation4 + $0xd0] sm:$0xff] %v720
    %833 = vst [vmem:[#allocation4 + $0xd8] sm:$0xff] %v723
    %834 = vst [vmem:[#allocation4 + $0xe0] sm:$0xff] %v728
    %835 = vst [vmem:[#allocation4 + $0xe8] sm:$0xff] %v731
    %836 = vst [vmem:[#allocation4 + $0xf0] sm:$0xff] %v736
    %837 = vst [vmem:[#allocation4 + $0xf8] sm:$0xff] %v739
    %838 = vst [vmem:[#allocation4 + $0x100] sm:$0xff] %v744
    %839 = vst [vmem:[#allocation4 + $0x108] sm:$0xff] %v747
    %840 = vst [vmem:[#allocation4 + $0x110] sm:$0xff] %v752
    %841 = vst [vmem:[#allocation4 + $0x118] sm:$0xff] %v755
    %842 = vst [vmem:[#allocation4 + $0x120] sm:$0xff] %v760
    %843 = vst [vmem:[#allocation4 + $0x128] sm:$0xff] %v763
    %844 = vst [vmem:[#allocation4 + $0x130] sm:$0xff] %v768
    %845 = vst [vmem:[#allocation4 + $0x138] sm:$0xff] %v771
    %846 = vst [vmem:[#allocation4 + $0x140] sm:$0xff] %v776
    %847 = vst [vmem:[#allocation4 + $0x148] sm:$0xff] %v779
    %848 = vst [vmem:[#allocation4 + $0x150] sm:$0xff] %v784
    %849 = vst [vmem:[#allocation4 + $0x158] sm:$0xff] %v787
    %850 = vst [vmem:[#allocation4 + $0x160] sm:$0xff] %v792
    %851 = vst [vmem:[#allocation4 + $0x168] sm:$0xff] %v795
    %852 = vst [vmem:[#allocation4 + $0x170] sm:$0xff] %v800
    %853 = vst [vmem:[#allocation4 + $0x178] sm:$0xff] %v803
    %v878 = vunpack.c.l.b16 %v493
    %v879 = vunpack.c.h.b16 %v493
    %v880 = vunpack.c.l.b16 %v494
    %v881 = vunpack.c.h.b16 %v494
    %v882 = vunpack.c.l.b16 %v495
    %v883 = vunpack.c.h.b16 %v495
    %v884 = vunpack.c.l.b16 %v496
    %v885 = vunpack.c.h.b16 %v496
    %v886 = vunpack.c.l.b16 %v497
    %v887 = vunpack.c.h.b16 %v497
    %v888 = vunpack.c.l.b16 %v498
    %v889 = vunpack.c.h.b16 %v498
    %v890 = vunpack.c.l.b16 %v499
    %v891 = vunpack.c.h.b16 %v499
    %v892 = vunpack.c.l.b16 %v500
    %v893 = vunpack.c.h.b16 %v500
    %v894 = vunpack.c.l.b16 %v501
    %v895 = vunpack.c.h.b16 %v501
    %v896 = vunpack.c.l.b16 %v502
    %v897 = vunpack.c.h.b16 %v502
    %v898 = vunpack.c.l.b16 %v503
    %v899 = vunpack.c.h.b16 %v503
    %v900 = vunpack.c.l.b16 %v504
    %v901 = vunpack.c.h.b16 %v504
    %v902 = vunpack.c.l.b16 %v505
    %v903 = vunpack.c.h.b16 %v505
    %v904 = vunpack.c.l.b16 %v506
    %v905 = vunpack.c.h.b16 %v506
    %v906 = vunpack.c.l.b16 %v507
    %v907 = vunpack.c.h.b16 %v507
    %v908 = vunpack.c.l.b16 %v508
    %v909 = vunpack.c.h.b16 %v508
    %v910 = vunpack.c.l.b16 %v509
    %v911 = vunpack.c.h.b16 %v509
    %v912 = vunpack.c.l.b16 %v510
    %v913 = vunpack.c.h.b16 %v510
    %v914 = vunpack.c.l.b16 %v511
    %v915 = vunpack.c.h.b16 %v511
    %v916 = vunpack.c.l.b16 %v512
    %v917 = vunpack.c.h.b16 %v512
    %v918 = vunpack.c.l.b16 %v513
    %v919 = vunpack.c.h.b16 %v513
    %v920 = vunpack.c.l.b16 %v514
    %v921 = vunpack.c.h.b16 %v514
    %v922 = vunpack.c.l.b16 %v515
    %v923 = vunpack.c.h.b16 %v515
    %v924 = vunpack.c.l.b16 %v516
    %v925 = vunpack.c.h.b16 %v516
    %v926 = vpack.c.b16 %v878, %v878
    %v927 = vpack.c.b16 %v879, %v879
    %v928 = vpack.c.b16 %v880, %v880
    %v929 = vpack.c.b16 %v881, %v881
    %v930 = vpack.c.b16 %v882, %v882
    %v931 = vpack.c.b16 %v883, %v883
    %v932 = vpack.c.b16 %v884, %v884
    %v933 = vpack.c.b16 %v885, %v885
    %v934 = vpack.c.b16 %v886, %v886
    %v935 = vpack.c.b16 %v887, %v887
    %v936 = vpack.c.b16 %v888, %v888
    %v937 = vpack.c.b16 %v889, %v889
    %v938 = vpack.c.b16 %v890, %v890
    %v939 = vpack.c.b16 %v891, %v891
    %v940 = vpack.c.b16 %v892, %v892
    %v941 = vpack.c.b16 %v893, %v893
    %v942 = vpack.c.b16 %v894, %v894
    %v943 = vpack.c.b16 %v895, %v895
    %v944 = vpack.c.b16 %v896, %v896
    %v945 = vpack.c.b16 %v897, %v897
    %v946 = vpack.c.b16 %v898, %v898
    %v947 = vpack.c.b16 %v899, %v899
    %v948 = vpack.c.b16 %v900, %v900
    %v949 = vpack.c.b16 %v901, %v901
    %v950 = vpack.c.b16 %v902, %v902
    %v951 = vpack.c.b16 %v903, %v903
    %v952 = vpack.c.b16 %v904, %v904
    %v953 = vpack.c.b16 %v905, %v905
    %v954 = vpack.c.b16 %v906, %v906
    %v955 = vpack.c.b16 %v907, %v907
    %v956 = vpack.c.b16 %v908, %v908
    %v957 = vpack.c.b16 %v909, %v909
    %v958 = vpack.c.b16 %v910, %v910
    %v959 = vpack.c.b16 %v911, %v911
    %v960 = vpack.c.b16 %v912, %v912
    %v961 = vpack.c.b16 %v913, %v913
    %v962 = vpack.c.b16 %v914, %v914
    %v963 = vpack.c.b16 %v915, %v915
    %v964 = vpack.c.b16 %v916, %v916
    %v965 = vpack.c.b16 %v917, %v917
    %v966 = vpack.c.b16 %v918, %v918
    %v967 = vpack.c.b16 %v919, %v919
    %v968 = vpack.c.b16 %v920, %v920
    %v969 = vpack.c.b16 %v921, %v921
    %v970 = vpack.c.b16 %v922, %v922
    %v971 = vpack.c.b16 %v923, %v923
    %v972 = vpack.c.b16 %v924, %v924
    %v973 = vpack.c.b16 %v925, %v925
    %1022 = vst [vmem:[#allocation2] sm:$0xf] %v926
    %1023 = vst [vmem:[#allocation2 + $0x4] sm:$0xf] %v927
    %1024 = vst [vmem:[#allocation2 + $0x8] sm:$0xf] %v928
    %1025 = vst [vmem:[#allocation2 + $0xc] sm:$0xf] %v929
    %1026 = vst [vmem:[#allocation2 + $0x10] sm:$0xf] %v930
    %1027 = vst [vmem:[#allocation2 + $0x14] sm:$0xf] %v931
    %1028 = vst [vmem:[#allocation2 + $0x18] sm:$0xf] %v932
    %1029 = vst [vmem:[#allocation2 + $0x1c] sm:$0xf] %v933
    %1030 = vst [vmem:[#allocation2 + $0x20] sm:$0xf] %v934
    %1031 = vst [vmem:[#allocation2 + $0x24] sm:$0xf] %v935
    %1032 = vst [vmem:[#allocation2 + $0x28] sm:$0xf] %v936
    %1033 = vst [vmem:[#allocation2 + $0x2c] sm:$0xf] %v937
    %1034 = vst [vmem:[#allocation2 + $0x30] sm:$0xf] %v938
    %1035 = vst [vmem:[#allocation2 + $0x34] sm:$0xf] %v939
    %1036 = vst [vmem:[#allocation2 + $0x38] sm:$0xf] %v940
    %1037 = vst [vmem:[#allocation2 + $0x3c] sm:$0xf] %v941
    %1038 = vst [vmem:[#allocation2 + $0x40] sm:$0xf] %v942
    %1039 = vst [vmem:[#allocation2 + $0x44] sm:$0xf] %v943
    %1040 = vst [vmem:[#allocation2 + $0x48] sm:$0xf] %v944
    %1041 = vst [vmem:[#allocation2 + $0x4c] sm:$0xf] %v945
    %1042 = vst [vmem:[#allocation2 + $0x50] sm:$0xf] %v946
    %1043 = vst [vmem:[#allocation2 + $0x54] sm:$0xf] %v947
    %1044 = vst [vmem:[#allocation2 + $0x58] sm:$0xf] %v948
    %1045 = vst [vmem:[#allocation2 + $0x5c] sm:$0xf] %v949
    %1046 = vst [vmem:[#allocation2 + $0x60] sm:$0xf] %v950
    %1047 = vst [vmem:[#allocation2 + $0x64] sm:$0xf] %v951
    %1048 = vst [vmem:[#allocation2 + $0x68] sm:$0xf] %v952
    %1049 = vst [vmem:[#allocation2 + $0x6c] sm:$0xf] %v953
    %1050 = vst [vmem:[#allocation2 + $0x70] sm:$0xf] %v954
    %1051 = vst [vmem:[#allocation2 + $0x74] sm:$0xf] %v955
    %1052 = vst [vmem:[#allocation2 + $0x78] sm:$0xf] %v956
    %1053 = vst [vmem:[#allocation2 + $0x7c] sm:$0xf] %v957
    %1054 = vst [vmem:[#allocation2 + $0x80] sm:$0xf] %v958
    %1055 = vst [vmem:[#allocation2 + $0x84] sm:$0xf] %v959
    %1056 = vst [vmem:[#allocation2 + $0x88] sm:$0xf] %v960
    %1057 = vst [vmem:[#allocation2 + $0x8c] sm:$0xf] %v961
    %1058 = vst [vmem:[#allocation2 + $0x90] sm:$0xf] %v962
    %1059 = vst [vmem:[#allocation2 + $0x94] sm:$0xf] %v963
    %1060 = vst [vmem:[#allocation2 + $0x98] sm:$0xf] %v964
    %1061 = vst [vmem:[#allocation2 + $0x9c] sm:$0xf] %v965
    %1062 = vst [vmem:[#allocation2 + $0xa0] sm:$0xf] %v966
    %1063 = vst [vmem:[#allocation2 + $0xa4] sm:$0xf] %v967
    %1064 = vst [vmem:[#allocation2 + $0xa8] sm:$0xf] %v968
    %1065 = vst [vmem:[#allocation2 + $0xac] sm:$0xf] %v969
    %1066 = vst [vmem:[#allocation2 + $0xb0] sm:$0xf] %v970
    %1067 = vst [vmem:[#allocation2 + $0xb4] sm:$0xf] %v971
    %1068 = vst [vmem:[#allocation2 + $0xb8] sm:$0xf] %v972
    %1069 = vst [vmem:[#allocation2 + $0xbc] sm:$0xf] %v973
    // Predicated region
    $region14: #{tpu_custom_call.1} parent=1 // pred_check
      _
    $region15: #{tpu_custom_call.1} parent=1 // pred_check_branch
      %1071 = sbr.rel (0) target = $region17
    $region16: #{tpu_custom_call.1} parent=1 // pred_region
      %s1073 = ssub.s32 3072, 3072
      %1074 = vsyncadd [#allocation3], %s1073
      %s1075 = sshll.u32 [#allocation2], 4
      %s1076 = int_to_ptr.vmem [resolvable:$true] %s1075
      %1081 = dma.vmem_to_hbm [thread:$0]  %s1076, 3072, %s3, [#allocation3], 64, 64, 4
    $region17: #{tpu_custom_call.1} parent=1 // pred_fallthru
      _
    // Predicated region
    $region18: #{tpu_custom_call.1} parent=1 // pred_check
      _
    $region19: #{tpu_custom_call.1} parent=1 // pred_check_branch
      %1083 = sbr.rel (0) target = $region21
    $region20: #{tpu_custom_call.1} parent=1 // pred_region
      %s1085 = ssub.s32 6144, 6144
      %1086 = vsyncadd [#allocation5], %s1085
      %s1087 = sshll.u32 [#allocation4], 4
      %s1088 = int_to_ptr.vmem [resolvable:$true] %s1087
      %1093 = dma.vmem_to_hbm [thread:$0]  %s1088, 6144, %s4, [#allocation5], 128, 128, 8
    $region21: #{tpu_custom_call.1} parent=1 // pred_fallthru
      _
    // Predicated region
    $region22: #{tpu_custom_call.1} parent=1 // pred_check
      _
    $region23: #{tpu_custom_call.1} parent=1 // pred_check_branch
      %1095 = sbr.rel (0) target = $region25
    $region24: #{tpu_custom_call.1} parent=1 // pred_region
      %1096 = dma.done [#allocation3], 3072
    $region25: #{tpu_custom_call.1} parent=1 // pred_fallthru
      _
    // Predicated region
    $region26: #{tpu_custom_call.1} parent=1 // pred_check
      _
    $region27: #{tpu_custom_call.1} parent=1 // pred_check_branch
      %1098 = sbr.rel (0) target = $region29
    $region28: #{tpu_custom_call.1} parent=1 // pred_region
      %1099 = dma.done [#allocation5], 6144
    $region29: #{tpu_custom_call.1} parent=1 // pred_fallthru
      _
    %1100 = vsyncpa [#allocation3], 1
    %1101 = vsyncpa [#allocation5], 1

</llo_original>
